<compile_context>
chip_gen: v7x
topology: tpu7x:2x2x1
jax: 0.10.0
libtpu: 0.0.40
codegen_flags: <defaults>
</compile_context>

<pallas_src>
import jax
import jax.numpy as jnp
from jax.experimental import pallas as pl
from jax.experimental.pallas import tpu as pltpu


# ----------------------------------------------------------------------------
# Kernels
# ----------------------------------------------------------------------------

def _fused_whole_kernel(params_ref, inp_ref, a1_ref, a2_ref, o_ref):
    """Grid: (5,) output channels.

    params_ref : SMEM f32[2, 8]  rows=(aux1, aux2),
                 cols=[conv_w, conv_b, bn_gamma, bn_beta, bn_eps, pad, pad, pad]
    inp_ref    : VMEM (B, H, W)  input channel min(c, 2)
    a1_ref     : VMEM (B, H, W)  aux1 channel (resident across the grid)
    a2_ref     : VMEM (B, H, W)  aux2 channel (resident across the grid)
    o_ref      : VMEM (B, H, W)  output channel c
    """
    c = pl.program_id(0)

    @pl.when(c < 3)
    def _copy():
        o_ref[...] = inp_ref[...].astype(o_ref.dtype)

    def _conv_bn(x_ref, row):
        w = params_ref[row, 0]
        b = params_ref[row, 1]
        gamma = params_ref[row, 2]
        beta = params_ref[row, 3]
        eps = params_ref[row, 4]

        x = x_ref[...].astype(jnp.float32)          # cast in-kernel (VPU, free)
        n = jnp.float32(x.size)
        s = jnp.sum(x)                              # single pass: sum + sum of squares
        ss = jnp.sum(x * x)
        mean_x = s / n
        var_x = ss / n - mean_x * mean_x
        # y = w*x + b  =>  mean_y = w*mean_x + b, var_y = w^2 * var_x
        inv_std = jax.lax.rsqrt(w * w * var_x + eps)
        scale = gamma * w * inv_std                 # conv + BN folded into one affine of x
        shift = beta - scale * mean_x
        o_ref[...] = (x * scale + shift).astype(o_ref.dtype)

    @pl.when(c == 3)
    def _aux1():
        _conv_bn(a1_ref, 0)

    @pl.when(c == 4)
    def _aux2():
        _conv_bn(a2_ref, 1)


def _stats_kernel(x_ref, s_ref, ss_ref):
    """Grid: (n_row_tiles,). One-pass sum / sum-of-squares of raw aux values into
    resident (1, 1) f32 accumulator outputs (single HBM read of the branch)."""
    t = pl.program_id(0)

    @pl.when(t == 0)
    def _init():
        s_ref[...] = jnp.zeros_like(s_ref)
        ss_ref[...] = jnp.zeros_like(ss_ref)

    x = x_ref[...].astype(jnp.float32)
    s_ref[...] += jnp.sum(x, keepdims=True)
    ss_ref[...] += jnp.sum(x * x, keepdims=True)


def _tiled_out_kernel(coef_ref, inp_ref, a1_ref, a2_ref, o_ref):
    """Grid: (5, n_h_tiles).

    coef_ref : SMEM f32[2, 2]  rows=(aux1, aux2), cols=[scale, shift] (conv+BN folded)
    blocks   : VMEM (B, th, W)
    """
    c = pl.program_id(0)

    @pl.when(c < 3)
    def _copy():
        o_ref[...] = inp_ref[...].astype(o_ref.dtype)

    def _affine(x_ref, row):
        x = x_ref[...].astype(jnp.float32)
        o_ref[...] = (x * coef_ref[row, 0] + coef_ref[row, 1]).astype(o_ref.dtype)

    @pl.when(c == 3)
    def _aux1():
        _affine(a1_ref, 0)

    @pl.when(c == 4)
    def _aux2():
        _affine(a2_ref, 1)


# ----------------------------------------------------------------------------
# Wrappers
# ----------------------------------------------------------------------------

def _pick_tile(n, cap):
    """Largest tile t <= cap with t | n and (t % 8 == 0 or t == n). Falls back to n
    (block == full dim is always a legal TPU block)."""
    cap = max(1, min(n, cap))
    for t in range(cap, 0, -1):
        if n % t == 0 and (t % 8 == 0 or t == n):
            return t
    return n


def _fused_whole_path(inputs, aux1, aux2, params, vmem_limit_bytes):
    B, _, H, W = inputs.shape
    chan_blk = (B, None, H, W)                      # channel dim squeezed in-kernel
    return pl.pallas_call(
        _fused_whole_kernel,
        out_shape=jax.ShapeDtypeStruct((B, 5, H, W), inputs.dtype),
        grid=(5,),
        in_specs=[
            pl.BlockSpec(memory_space=pltpu.MemorySpace.SMEM),                    # params (2, 8)
            pl.BlockSpec(chan_blk, lambda c: (0, jnp.minimum(c, 2), 0, 0)),       # inputs
            pl.BlockSpec(chan_blk, lambda c: (0, 0, 0, 0)),                       # aux1 (resident)
            pl.BlockSpec(chan_blk, lambda c: (0, 0, 0, 0)),                       # aux2 (resident)
        ],
        out_specs=pl.BlockSpec(chan_blk, lambda c: (0, c, 0, 0)),
        compiler_params=pltpu.CompilerParams(
            dimension_semantics=("parallel",),      # v7x: shard channels across 2 TCs
            vmem_limit_bytes=vmem_limit_bytes,
        ),
    )(params, inputs, aux1, aux2)


def _branch_stats(aux, params_row, vmem_limit_bytes, max_tile_rows):
    """Tiled single-pass stats over one (B, 1, H, W) aux branch; folds
    Conv2d(1,1,1) + BatchNorm2d(1) into a per-element (scale, shift)."""
    B, _, H, W = aux.shape
    aux2d = aux.reshape(B * H, W)                   # free reshape (contiguous)
    rows = B * H
    tr_cap = min(max_tile_rows, max(8, vmem_limit_bytes // (8 * W * 4)))
    tr = _pick_tile(rows, tr_cap)

    s, ss = pl.pallas_call(
        _stats_kernel,
        out_shape=(jax.ShapeDtypeStruct((1, 1), jnp.float32),
                   jax.ShapeDtypeStruct((1, 1), jnp.float32)),
        grid=(rows // tr,),
        in_specs=[pl.BlockSpec((tr, W), lambda t: (t, 0))],
        out_specs=(pl.BlockSpec((1, 1), lambda t: (0, 0)),
                   pl.BlockSpec((1, 1), lambda t: (0, 0))),
        compiler_params=pltpu.CompilerParams(
            dimension_semantics=("arbitrary",),     # resident accumulator outputs
            vmem_limit_bytes=vmem_limit_bytes,
        ),
    )(aux2d)

    w, b, gamma, beta, eps = (params_row[i] for i in range(5))
    n = jnp.float32(B * H * W)
    mean_x = s[0, 0] / n
    var_x = ss[0, 0] / n - mean_x * mean_x
    inv_std = jax.lax.rsqrt(w * w * var_x + eps)    # var(w*x + b) = w^2 * var(x)
    scale = gamma * w * inv_std
    shift = beta - scale * mean_x
    return jnp.stack([scale, shift])


def _tiled_path(inputs, aux1, aux2, params, vmem_limit_bytes, max_tile_rows):
    B, _, H, W = inputs.shape
    coef = jnp.stack([
        _branch_stats(aux1, params[0], vmem_limit_bytes, max_tile_rows),
        _branch_stats(aux2, params[1], vmem_limit_bytes, max_tile_rows),
    ]).astype(jnp.float32)                          # (2, 2): [scale, shift] per branch

    th_cap = min(max_tile_rows, max(8, vmem_limit_bytes // (12 * B * W * 4)))
    th = _pick_tile(H, th_cap)
    blk = (B, None, th, W)
    return pl.pallas_call(
        _tiled_out_kernel,
        out_shape=jax.ShapeDtypeStruct((B, 5, H, W), inputs.dtype),
        grid=(5, H // th),
        in_specs=[
            pl.BlockSpec(memory_space=pltpu.MemorySpace.SMEM),                    # coef (2, 2)
            pl.BlockSpec(blk, lambda c, t: (0, jnp.minimum(c, 2),
                                            jnp.where(c < 3, t, 0), 0)),          # inputs
            pl.BlockSpec(blk, lambda c, t: (0, 0, jnp.where(c == 3, t, 0), 0)),   # aux1
            pl.BlockSpec(blk, lambda c, t: (0, 0, jnp.where(c == 4, t, 0), 0)),   # aux2
        ],
        out_specs=pl.BlockSpec(blk, lambda c, t: (0, c, t, 0)),
        compiler_params=pltpu.CompilerParams(
            dimension_semantics=("parallel", "arbitrary"),
            vmem_limit_bytes=vmem_limit_bytes,
        ),
    )(coef, inputs, aux1, aux2)


def input_aux2_forward(inputs, aux1, aux2, params1, params2, *,
                       vmem_limit_bytes=32 * 1024 * 1024,
                       max_tile_rows=512,
                       force_tiled=False):
    """InputAux2.forward: fused aux_norm1 / aux_norm2 / channel concat."""
    B, Cin, H, W = inputs.shape
    assert Cin == 3 and aux1.shape == (B, 1, H, W) and aux2.shape == (B, 1, H, W)
    params = jnp.stack([params1, params2]).astype(jnp.float32)      # (2, 8) in SMEM

    # Whole-channel fused path keeps ~8-12 (double-buffered) channel slabs resident.
    est_bytes = 12 * B * H * W * 4 + (2 << 20)
    if force_tiled or est_bytes > vmem_limit_bytes:
        return _tiled_path(inputs, aux1, aux2, params, vmem_limit_bytes, max_tile_rows)
    return _fused_whole_path(inputs, aux1, aux2, params, vmem_limit_bytes)


def make_params(key):
    """One _make_layer() branch: Conv2d(1,1,1) w/b + BatchNorm2d(1) gamma/beta/eps, f32[8]."""
    kw, kb = jax.random.split(key)
    conv_w = jax.random.uniform(kw, (), jnp.float32, -1.0, 1.0)
    conv_b = jax.random.uniform(kb, (), jnp.float32, -1.0, 1.0)
    gamma = jnp.float32(1.0)    # PyTorch BN default init
    beta = jnp.float32(0.0)
    eps = jnp.float32(1e-5)
    return jnp.stack([conv_w, conv_b, gamma, beta, eps,
                      jnp.float32(0.0), jnp.float32(0.0), jnp.float32(0.0)])


if __name__ == "__main__":
    key = jax.random.PRNGKey(0)
    k_in, k_a1, k_a2, k_p1, k_p2 = jax.random.split(key, 5)

    B, H, W = 2, 16, 16
    inputs = jax.random.uniform(k_in, (B, 3, H, W), jnp.float32)
    aux1 = jax.random.uniform(k_a1, (B, 1, H, W), jnp.float32)
    aux2 = jax.random.uniform(k_a2, (B, 1, H, W), jnp.float32)

    params1 = make_params(k_p1)   # aux_norm1
    params2 = make_params(k_p2)   # aux_norm2

    # Pure-JAX reference of the same math (training-mode BN with batch stats).
    def ref_branch(x, p):
        y = x * p[0] + p[1]
        mean = jnp.mean(y)
        var = jnp.mean((y - mean) ** 2)
        return p[2] * (y - mean) * jax.lax.rsqrt(var + p[4]) + p[3]

    ref = jnp.concatenate([inputs, ref_branch(aux1, params1),
                           ref_branch(aux2, params2)], axis=1)

    # Primary fused whole-channel path.
    out = input_aux2_forward(inputs, aux1, aux2, params1, params2)
    out = jax.block_until_ready(out)
    assert out.shape == (B, 5, H, W), out.shape
    assert jnp.allclose(out, ref, atol=1e-4, rtol=1e-4), \
        float(jnp.max(jnp.abs(out - ref)))

    # Also exercise the size-guarded tiled fallback (v7x small-VMEM route).
    out_tiled = input_aux2_forward(inputs, aux1, aux2, params1, params2,
                                   force_tiled=True, max_tile_rows=8)
    out_tiled = jax.block_until_ready(out_tiled)
    assert jnp.allclose(out_tiled, ref, atol=1e-4, rtol=1e-4), \
        float(jnp.max(jnp.abs(out_tiled - ref)))

    print("KERNEL_OK")
</pallas_src>

<mosaic_0001>
module attributes {stable_mosaic.version = 11 : i64} {
  func.func @_fused_whole_kernel(%arg0: i32, %arg1: memref<2x8xf32, #tpu.memory_space<smem>>, %arg2: memref<2x1x16x16xf32, #tpu.memory_space<vmem>>, %arg3: memref<2x1x16x16xf32, #tpu.memory_space<vmem>>, %arg4: memref<2x1x16x16xf32, #tpu.memory_space<vmem>>, %arg5: memref<2x1x16x16xf32, #tpu.memory_space<vmem>>) attributes {dimension_semantics = [#tpu.dimension_semantics<parallel>], iteration_bounds = array<i64: 5>, scalar_prefetch = 0 : i64, scratch_operands = 0 : i64, tpu.core_type = #tpu.core_type<tc>, window_params = [{transform_indices = @transform_0, window_bounds = array<i64: 2, 8>}, {transform_indices = @transform_1, window_bounds = array<i64: 2, 1, 16, 16>}, {pipeline_mode = #tpu.pipeline_mode<synchronous>, transform_indices = @transform_2, window_bounds = array<i64: 2, 1, 16, 16>}, {pipeline_mode = #tpu.pipeline_mode<synchronous>, transform_indices = @transform_3, window_bounds = array<i64: 2, 1, 16, 16>}, {transform_indices = @transform_4, window_bounds = array<i64: 2, 1, 16, 16>}]} {
    %c3_i32 = arith.constant 3 : i32
    %0 = arith.cmpi slt, %arg0, %c3_i32 : i32
    %1 = arith.extui %0 : i1 to i32
    %c0_i32 = arith.constant 0 : i32
    %2 = arith.cmpi ne, %1, %c0_i32 : i32
    scf.if %2 {
      %c0 = arith.constant 0 : index
      %c0_3 = arith.constant 0 : index
      %c0_4 = arith.constant 0 : index
      %c0_5 = arith.constant 0 : index
      %9 = vector.load %arg2[%c0, %c0_3, %c0_4, %c0_5] : memref<2x1x16x16xf32, #tpu.memory_space<vmem>>, vector<2x1x16x16xf32>
      %10 = vector.shape_cast %9 : vector<2x1x16x16xf32> to vector<2x16x16xf32>
      %c0_6 = arith.constant 0 : index
      %c0_7 = arith.constant 0 : index
      %c0_8 = arith.constant 0 : index
      %c0_9 = arith.constant 0 : index
      %11 = vector.load %arg5[%c0_6, %c0_7, %c0_8, %c0_9] : memref<2x1x16x16xf32, #tpu.memory_space<vmem>>, vector<2x1x16x16xf32>
      %12 = vector.shape_cast %11 : vector<2x1x16x16xf32> to vector<2x16x16xf32>
      %13 = vector.shape_cast %10 : vector<2x16x16xf32> to vector<2x1x16x16xf32>
      tpu.vector_store %arg5[%c0_6, %c0_7, %c0_8, %c0_9], %13 {strides = array<i32>} : memref<2x1x16x16xf32, #tpu.memory_space<vmem>>, vector<2x1x16x16xf32>,
    } else {
    }
    %c3_i32_0 = arith.constant 3 : i32
    %3 = arith.cmpi eq, %arg0, %c3_i32_0 : i32
    %4 = arith.extui %3 : i1 to i32
    %c0_i32_1 = arith.constant 0 : i32
    %5 = arith.cmpi ne, %4, %c0_i32_1 : i32
    scf.if %5 {
      %c0 = arith.constant 0 : index
      %c0_3 = arith.constant 0 : index
      %9 = memref.load %arg1[%c0, %c0_3] : memref<2x8xf32, #tpu.memory_space<smem>>
      %c0_4 = arith.constant 0 : index
      %c2 = arith.constant 2 : index
      %10 = memref.load %arg1[%c0_4, %c2] : memref<2x8xf32, #tpu.memory_space<smem>>
      %c0_5 = arith.constant 0 : index
      %c3 = arith.constant 3 : index
      %11 = memref.load %arg1[%c0_5, %c3] : memref<2x8xf32, #tpu.memory_space<smem>>
      %c0_6 = arith.constant 0 : index
      %c4 = arith.constant 4 : index
      %12 = memref.load %arg1[%c0_6, %c4] : memref<2x8xf32, #tpu.memory_space<smem>>
      %c0_7 = arith.constant 0 : index
      %c0_8 = arith.constant 0 : index
      %c0_9 = arith.constant 0 : index
      %c0_10 = arith.constant 0 : index
      %13 = vector.load %arg3[%c0_7, %c0_8, %c0_9, %c0_10] : memref<2x1x16x16xf32, #tpu.memory_space<vmem>>, vector<2x1x16x16xf32>
      %14 = vector.shape_cast %13 : vector<2x1x16x16xf32> to vector<2x16x16xf32>
      %15 = vector.shape_cast %14 : vector<2x16x16xf32> to vector<1x2x16x16xf32>
      %cst = arith.constant dense<0.000000e+00> : vector<1xf32>
      %16 = vector.multi_reduction <add>, %15, %cst [1, 2, 3] : vector<1x2x16x16xf32> to vector<1xf32>
      %17 = vector.shape_cast %16 : vector<1xf32> to vector<1x1x1x1xf32>
      %18 = vector.extract %17[0, 0, 0, 0] : f32 from vector<1x1x1x1xf32>
      %19 = arith.mulf %14, %14 : vector<2x16x16xf32>
      %20 = vector.shape_cast %19 : vector<2x16x16xf32> to vector<1x2x16x16xf32>
      %cst_11 = arith.constant dense<0.000000e+00> : vector<1xf32>
      %21 = vector.multi_reduction <add>, %20, %cst_11 [1, 2, 3] : vector<1x2x16x16xf32> to vector<1xf32>
      %22 = vector.shape_cast %21 : vector<1xf32> to vector<1x1x1x1xf32>
      %23 = vector.extract %22[0, 0, 0, 0] : f32 from vector<1x1x1x1xf32>
      %cst_12 = arith.constant 5.120000e+02 : f32
      %24 = arith.divf %18, %cst_12 : f32
      %cst_13 = arith.constant 5.120000e+02 : f32
      %25 = arith.divf %23, %cst_13 : f32
      %26 = arith.mulf %24, %24 : f32
      %27 = arith.subf %25, %26 : f32
      %28 = arith.mulf %9, %9 : f32
      %29 = arith.mulf %28, %27 : f32
      %30 = arith.addf %29, %12 : f32
      %31 = math.rsqrt %30 : f32
      %32 = arith.mulf %10, %9 : f32
      %33 = arith.mulf %32, %31 : f32
      %34 = arith.mulf %33, %24 : f32
      %35 = arith.subf %11, %34 : f32
      %36 = vector.broadcast %33 : f32 to vector<2x16x16xf32>
      %37 = arith.mulf %14, %36 : vector<2x16x16xf32>
      %38 = vector.broadcast %35 : f32 to vector<2x16x16xf32>
      %39 = arith.addf %37, %38 : vector<2x16x16xf32>
      %c0_14 = arith.constant 0 : index
      %c0_15 = arith.constant 0 : index
      %c0_16 = arith.constant 0 : index
      %c0_17 = arith.constant 0 : index
      %40 = vector.load %arg5[%c0_14, %c0_15, %c0_16, %c0_17] : memref<2x1x16x16xf32, #tpu.memory_space<vmem>>, vector<2x1x16x16xf32>
      %41 = vector.shape_cast %40 : vector<2x1x16x16xf32> to vector<2x16x16xf32>
      %42 = vector.shape_cast %39 : vector<2x16x16xf32> to vector<2x1x16x16xf32>
      tpu.vector_store %arg5[%c0_14, %c0_15, %c0_16, %c0_17], %42 {strides = array<i32>} : memref<2x1x16x16xf32, #tpu.memory_space<vmem>>, vector<2x1x16x16xf32>,
    } else {
    }
    %c4_i32 = arith.constant 4 : i32
    %6 = arith.cmpi eq, %arg0, %c4_i32 : i32
    %7 = arith.extui %6 : i1 to i32
    %c0_i32_2 = arith.constant 0 : i32
    %8 = arith.cmpi ne, %7, %c0_i32_2 : i32
    scf.if %8 {
      %c1 = arith.constant 1 : index
      %c0 = arith.constant 0 : index
      %9 = memref.load %arg1[%c1, %c0] : memref<2x8xf32, #tpu.memory_space<smem>>
      %c1_3 = arith.constant 1 : index
      %c2 = arith.constant 2 : index
      %10 = memref.load %arg1[%c1_3, %c2] : memref<2x8xf32, #tpu.memory_space<smem>>
      %c1_4 = arith.constant 1 : index
      %c3 = arith.constant 3 : index
      %11 = memref.load %arg1[%c1_4, %c3] : memref<2x8xf32, #tpu.memory_space<smem>>
      %c1_5 = arith.constant 1 : index
      %c4 = arith.constant 4 : index
      %12 = memref.load %arg1[%c1_5, %c4] : memref<2x8xf32, #tpu.memory_space<smem>>
      %c0_6 = arith.constant 0 : index
      %c0_7 = arith.constant 0 : index
      %c0_8 = arith.constant 0 : index
      %c0_9 = arith.constant 0 : index
      %13 = vector.load %arg4[%c0_6, %c0_7, %c0_8, %c0_9] : memref<2x1x16x16xf32, #tpu.memory_space<vmem>>, vector<2x1x16x16xf32>
      %14 = vector.shape_cast %13 : vector<2x1x16x16xf32> to vector<2x16x16xf32>
      %15 = vector.shape_cast %14 : vector<2x16x16xf32> to vector<1x2x16x16xf32>
      %cst = arith.constant dense<0.000000e+00> : vector<1xf32>
      %16 = vector.multi_reduction <add>, %15, %cst [1, 2, 3] : vector<1x2x16x16xf32> to vector<1xf32>
      %17 = vector.shape_cast %16 : vector<1xf32> to vector<1x1x1x1xf32>
      %18 = vector.extract %17[0, 0, 0, 0] : f32 from vector<1x1x1x1xf32>
      %19 = arith.mulf %14, %14 : vector<2x16x16xf32>
      %20 = vector.shape_cast %19 : vector<2x16x16xf32> to vector<1x2x16x16xf32>
      %cst_10 = arith.constant dense<0.000000e+00> : vector<1xf32>
      %21 = vector.multi_reduction <add>, %20, %cst_10 [1, 2, 3] : vector<1x2x16x16xf32> to vector<1xf32>
      %22 = vector.shape_cast %21 : vector<1xf32> to vector<1x1x1x1xf32>
      %23 = vector.extract %22[0, 0, 0, 0] : f32 from vector<1x1x1x1xf32>
      %cst_11 = arith.constant 5.120000e+02 : f32
      %24 = arith.divf %18, %cst_11 : f32
      %cst_12 = arith.constant 5.120000e+02 : f32
      %25 = arith.divf %23, %cst_12 : f32
      %26 = arith.mulf %24, %24 : f32
      %27 = arith.subf %25, %26 : f32
      %28 = arith.mulf %9, %9 : f32
      %29 = arith.mulf %28, %27 : f32
      %30 = arith.addf %29, %12 : f32
      %31 = math.rsqrt %30 : f32
      %32 = arith.mulf %10, %9 : f32
      %33 = arith.mulf %32, %31 : f32
      %34 = arith.mulf %33, %24 : f32
      %35 = arith.subf %11, %34 : f32
      %36 = vector.broadcast %33 : f32 to vector<2x16x16xf32>
      %37 = arith.mulf %14, %36 : vector<2x16x16xf32>
      %38 = vector.broadcast %35 : f32 to vector<2x16x16xf32>
      %39 = arith.addf %37, %38 : vector<2x16x16xf32>
      %c0_13 = arith.constant 0 : index
      %c0_14 = arith.constant 0 : index
      %c0_15 = arith.constant 0 : index
      %c0_16 = arith.constant 0 : index
      %40 = vector.load %arg5[%c0_13, %c0_14, %c0_15, %c0_16] : memref<2x1x16x16xf32, #tpu.memory_space<vmem>>, vector<2x1x16x16xf32>
      %41 = vector.shape_cast %40 : vector<2x1x16x16xf32> to vector<2x16x16xf32>
      %42 = vector.shape_cast %39 : vector<2x16x16xf32> to vector<2x1x16x16xf32>
      tpu.vector_store %arg5[%c0_13, %c0_14, %c0_15, %c0_16], %42 {strides = array<i32>} : memref<2x1x16x16xf32, #tpu.memory_space<vmem>>, vector<2x1x16x16xf32>,
    } else {
    }
    return
  }
  func.func @transform_0(%arg0: i32) -> (i32, i32) {
    %c0_i32 = arith.constant 0 : i32
    %c0_i32_0 = arith.constant 0 : i32
    %c0_i32_1 = arith.constant 0 : i32
    return %c0_i32, %c0_i32_0 : i32, i32
  }
  func.func @transform_1(%arg0: i32) -> (i32, i32, i32, i32) {
    %c2_i32 = arith.constant 2 : i32
    %0 = arith.minsi %arg0, %c2_i32 : i32
    %c0_i32 = arith.constant 0 : i32
    %c0_i32_0 = arith.constant 0 : i32
    %c0_i32_1 = arith.constant 0 : i32
    %c0_i32_2 = arith.constant 0 : i32
    return %c0_i32, %0, %c0_i32_0, %c0_i32_1 : i32, i32, i32, i32
  }
  func.func @transform_2(%arg0: i32) -> (i32, i32, i32, i32) {
    %c0_i32 = arith.constant 0 : i32
    %c0_i32_0 = arith.constant 0 : i32
    %c0_i32_1 = arith.constant 0 : i32
    %c0_i32_2 = arith.constant 0 : i32
    %c0_i32_3 = arith.constant 0 : i32
    return %c0_i32, %c0_i32_0, %c0_i32_1, %c0_i32_2 : i32, i32, i32, i32
  }
  func.func @transform_3(%arg0: i32) -> (i32, i32, i32, i32) {
    %c0_i32 = arith.constant 0 : i32
    %c0_i32_0 = arith.constant 0 : i32
    %c0_i32_1 = arith.constant 0 : i32
    %c0_i32_2 = arith.constant 0 : i32
    %c0_i32_3 = arith.constant 0 : i32
    return %c0_i32, %c0_i32_0, %c0_i32_1, %c0_i32_2 : i32, i32, i32, i32
  }
  func.func @transform_4(%arg0: i32) -> (i32, i32, i32, i32) {
    %c0_i32 = arith.constant 0 : i32
    %c0_i32_0 = arith.constant 0 : i32
    %c0_i32_1 = arith.constant 0 : i32
    %c0_i32_2 = arith.constant 0 : i32
    return %c0_i32, %arg0, %c0_i32_0, %c0_i32_1 : i32, i32, i32, i32
  }
}

</mosaic_0001>

<llo_original>
// kernel: tpu_custom_call.1
$region0: #{tpu_custom_call.1}
  #allocation0 [shape = 'u32[]', space=smem, size = 0x4, offset = 0x4, fixed_abs, tag = 'smem constant byte address 0x4 - core index']
  #allocation1 [shape = 'u32[144,128]{1,0:T(1,128)}', space=vmem, size = 0x12000, scoped, tag = 'internal scratch']
  #allocation11 [shape = 's32[]', space=sflag, size = 0x4, offset = 0, fixed_abs, tag = 'sflag constant byte address 0x0 - dummy sync flag']
  #allocation13 [shape = 's32[]', space=sflag, size = 0x4, offset = 0, fixed_abs, tag = 'sflag constant byte address 0x0 - dummy sync flag']
  %s0 = inlined_call_operand.hbm [shape: f32[2,8], index: 0, kind: input, shape index: {}]
  %s1 = inlined_call_operand.hbm [shape: f32[2,3,16,16], index: 1, kind: input, shape index: {}]
  %s2 = inlined_call_operand.hbm [shape: f32[2,1,16,16], index: 2, kind: input, shape index: {}]
  %s3 = inlined_call_operand.hbm [shape: f32[2,1,16,16], index: 3, kind: input, shape index: {}]
  %s4 = inlined_call_operand.hbm [shape: f32[2,5,16,16], index: 4, kind: output, shape index: {}]
  %s5 = sld [smem:[#allocation0]]
  $region77: #{tpu_custom_call.1} parent=0
    _
  %s7 = ssub.s32 1, %s5
  %s8 = scalar_select 0, %s7, %s5
  $region1: #{tpu_custom_call.1} parent=0
    #allocation2 [shape = 'u8[1024]{0}', space=smem, size = 0x400, scoped, tag = 'input window, operand 0, single buffered']
    #allocation3 [shape = 's32[2]{0}', space=sflag, size = 0x8, scoped, tag = 'scoped memory for tpu_custom_call.1']
    #allocation4 [shape = 's32[2]{0}', space=sflag, size = 0x8, scoped, tag = 'scoped memory for tpu_custom_call.1']
    #allocation5 [shape = 's32[2]{0}', space=sflag, size = 0x8, scoped, tag = 'scoped memory for tpu_custom_call.1']
    #allocation6 [shape = 'u8[32768]{0}', space=vmem, size = 0x8000, scoped, tag = 'input window, operand 1']
    #allocation7 [shape = 'u8[16384]{0}', space=vmem, size = 0x4000, scoped, tag = 'input window, operand 2, single buffered']
    #allocation8 [shape = 's32[1]{0}', space=sflag, size = 0x4, scoped, tag = 'scoped memory for tpu_custom_call.1']
    #allocation9 [shape = 'u8[16384]{0}', space=vmem, size = 0x4000, scoped, tag = 'input window, operand 3, single buffered']
    #allocation10 [shape = 'u8[32768]{0}', space=vmem, size = 0x8000, scoped, tag = 'output window, operand 0']
    %9 = vsyncpa [#allocation5], 0
    %10 = vsyncpa [#allocation3], 0
    %s11 = scalar_lea.sflag [#allocation3], 1
    %12 = vsyncpa %s11, 0
    %13 = vsyncpa [#allocation8], 0
    %14 = vsyncpa [#allocation4], 0
    %s15 = scalar_lea.sflag [#allocation4], 1
    %16 = vsyncpa %s15, 0
    loop: start=0, step=1, limit=7
    $region2: #{tpu_custom_call.1} parent=1 // loop_pre_header
      _
    $region3: #{tpu_custom_call.1} parent=1 // loop_header
      %s18 = sphi 0, %s22
      %p19 = scmp.ge.s32.totalorder %s18, 7
      %s26 = sphi 0, %s26
      %s28 = sphi 0, %s26
      %s29 = sphi 0, %s28
      %s43 = sphi 0, %s29
      %s53 = sphi 0, %s55
      %s56 = sphi 0, %s53
      %s57 = sphi 0, %s56
      %s73 = sphi 0, %s57
      %s77 = sphi 0, %s77
      %s79 = sphi 0, %s77
      %s80 = sphi 0, %s79
      %s94 = sphi 0, %s80
      %s98 = sphi 0, %s98
      %s100 = sphi 0, %s98
      %s101 = sphi 0, %s100
      %s115 = sphi 0, %s101
      %s121 = sphi 0, %s123
      %s124 = sphi 0, %s121
      %s125 = sphi 0, %s124
      %s141 = sphi 0, %s125
    $region4: #{tpu_custom_call.1} parent=1 // loop_header_branch
      %21 = sbr.rel (%p19) target = $region8
    $region5: #{tpu_custom_call.1} parent=1 // loop_body
      %s23 = ssub.s32 %s18, 1
      %s24 = ssub.s32 %s18, 2
      %s25 = sadd.s32 %s18, 1
      %s27 = sadd.s32 %s26, 1
      %p30 = scmp.eq.s32.totalorder %s18, 4
      %p31 = scmp.ne.s32.totalorder %s26, %s28
      %p32 = scmp.eq.s32.totalorder %s18, 0
      %p33 = por %p31, %p32
      %p34 = scmp.ne.s32.totalorder %s26, %s28
      %p35 = scmp.eq.s32.totalorder %s23, 4
      %p36 = por %p34, %p35
      %p37 = scmp.ne.s32.totalorder %s28, %s29
      %p38 = scmp.eq.s32.totalorder %s23, 0
      %p39 = por %p37, %p38
      %p40 = scmp.ne.s32.totalorder %s28, %s29
      %p41 = scmp.eq.s32.totalorder %s24, 4
      %p42 = por %p40, %p41
      %p44 = scmp.ne.s32.totalorder %s29, %s43
      %p45 = scmp.eq.s32.totalorder %s24, 0
      %p46 = por %p44, %p45
      %p47 = scmp.lt.s32.totalorder %s18, 2
      %s48 = scalar_select %p47, %s18, 2
      %p49 = scmp.lt.s32.totalorder %s25, 2
      %s50 = scalar_select %p49, %s25, 2
      %s51 = ssub.s32 %s48, %s50
      %p52 = scmp.eq.s32.totalorder %s51, 0
      %s54 = sadd.s32 %s53, 1
      %s55 = scalar_select %p52, %s53, %s54
      %p58 = pneg %p52
      %p59 = scmp.eq.s32.totalorder %s18, 4
      %p60 = por %p58, %p59
      %p61 = scmp.ne.s32.totalorder %s53, %s56
      %p62 = scmp.eq.s32.totalorder %s18, 0
      %p63 = por %p61, %p62
      %p64 = scmp.ne.s32.totalorder %s53, %s56
      %p65 = scmp.eq.s32.totalorder %s23, 4
      %p66 = por %p64, %p65
      %p67 = scmp.ne.s32.totalorder %s56, %s57
      %p68 = scmp.eq.s32.totalorder %s23, 0
      %p69 = por %p67, %p68
      %p70 = scmp.ne.s32.totalorder %s56, %s57
      %p71 = scmp.eq.s32.totalorder %s24, 4
      %p72 = por %p70, %p71
      %p74 = scmp.ne.s32.totalorder %s57, %s73
      %p75 = scmp.eq.s32.totalorder %s24, 0
      %p76 = por %p74, %p75
      %s78 = sadd.s32 %s77, 1
      %p81 = scmp.eq.s32.totalorder %s18, 4
      %p82 = scmp.ne.s32.totalorder %s77, %s79
      %p83 = scmp.eq.s32.totalorder %s18, 0
      %p84 = por %p82, %p83
      %p85 = scmp.ne.s32.totalorder %s77, %s79
      %p86 = scmp.eq.s32.totalorder %s23, 4
      %p87 = por %p85, %p86
      %p88 = scmp.ne.s32.totalorder %s79, %s80
      %p89 = scmp.eq.s32.totalorder %s23, 0
      %p90 = por %p88, %p89
      %p91 = scmp.ne.s32.totalorder %s79, %s80
      %p92 = scmp.eq.s32.totalorder %s24, 4
      %p93 = por %p91, %p92
      %p95 = scmp.ne.s32.totalorder %s80, %s94
      %p96 = scmp.eq.s32.totalorder %s24, 0
      %p97 = por %p95, %p96
      %s99 = sadd.s32 %s98, 1
      %p102 = scmp.eq.s32.totalorder %s18, 4
      %p103 = scmp.ne.s32.totalorder %s98, %s100
      %p104 = scmp.eq.s32.totalorder %s18, 0
      %p105 = por %p103, %p104
      %p106 = scmp.ne.s32.totalorder %s98, %s100
      %p107 = scmp.eq.s32.totalorder %s23, 4
      %p108 = por %p106, %p107
      %p109 = scmp.ne.s32.totalorder %s100, %s101
      %p110 = scmp.eq.s32.totalorder %s23, 0
      %p111 = por %p109, %p110
      %p112 = scmp.ne.s32.totalorder %s100, %s101
      %p113 = scmp.eq.s32.totalorder %s24, 4
      %p114 = por %p112, %p113
      %p116 = scmp.ne.s32.totalorder %s101, %s115
      %p117 = scmp.eq.s32.totalorder %s24, 0
      %p118 = por %p116, %p117
      %s119 = ssub.s32 %s18, %s25
      %p120 = scmp.eq.s32.totalorder %s119, 0
      %s122 = sadd.s32 %s121, 1
      %s123 = scalar_select %p120, %s121, %s122
      %p126 = pneg %p120
      %p127 = scmp.eq.s32.totalorder %s18, 4
      %p128 = por %p126, %p127
      %p129 = scmp.ne.s32.totalorder %s121, %s124
      %p130 = scmp.eq.s32.totalorder %s18, 0
      %p131 = por %p129, %p130
      %p132 = scmp.ne.s32.totalorder %s121, %s124
      %p133 = scmp.eq.s32.totalorder %s23, 4
      %p134 = por %p132, %p133
      %p135 = scmp.ne.s32.totalorder %s124, %s125
      %p136 = scmp.eq.s32.totalorder %s23, 0
      %p137 = por %p135, %p136
      %p138 = scmp.ne.s32.totalorder %s124, %s125
      %p139 = scmp.eq.s32.totalorder %s24, 4
      %p140 = por %p138, %p139
      %p142 = scmp.ne.s32.totalorder %s125, %s141
      %p143 = scmp.eq.s32.totalorder %s24, 0
      %p144 = por %p142, %p143
      %p145 = scmp.le.s32.totalorder 1, %s18
      %p146 = scmp.lt.s32.totalorder %s18, 6
      %p147 = pnand %p145, %p146
      %p148 = pneg %p147
      // Predicated region
      $region9: #{tpu_custom_call.1} parent=5 // pred_check
        _
      $region10: #{tpu_custom_call.1} parent=5 // pred_check_branch
        %150 = sbr.rel (%p147) target = $region12
      $region11: #{tpu_custom_call.1} parent=5 // pred_region
        %s151 = ssub.s32 %s18, 1
        // Predicated region
        $region13: #{tpu_custom_call.1} parent=11 // pred_check
          %p152 = pneg %p39
        $region14: #{tpu_custom_call.1} parent=11 // pred_check_branch
          %154 = sbr.rel (%p152) target = $region16
        $region15: #{tpu_custom_call.1} parent=11 // pred_region
          %s156 = ssub.s32 32, 32
          %157 = vsyncadd [#allocation5], %s156
          %160 = dma.hbm_to_smem %s0, 32, [#allocation2], [#allocation5]
        $region16: #{tpu_custom_call.1} parent=11 // pred_fallthru
          _
        // Predicated region
        $region17: #{tpu_custom_call.1} parent=11 // pred_check
          %p161 = pneg %p90
        $region18: #{tpu_custom_call.1} parent=11 // pred_check_branch
          %163 = sbr.rel (%p161) target = $region20
        $region19: #{tpu_custom_call.1} parent=11 // pred_region
          %s165 = ssub.s32 512, 512
          %166 = vsyncadd [#allocation8], %s165
          %s167 = sshll.u32 [#allocation7], 4
          %s168 = int_to_ptr.vmem [resolvable:$true] %s167
          %173 = dma.hbm_to_vmem [thread:$0]  %s2, 512, %s168, [#allocation8], 128, 128, 8
        $region20: #{tpu_custom_call.1} parent=11 // pred_fallthru
          _
        // Predicated region
        $region21: #{tpu_custom_call.1} parent=11 // pred_check
          %p174 = pneg %p111
        $region22: #{tpu_custom_call.1} parent=11 // pred_check_branch
          %176 = sbr.rel (%p174) target = $region24
        $region23: #{tpu_custom_call.1} parent=11 // pred_region
          %s178 = ssub.s32 512, 512
          %179 = vsyncadd [#allocation8], %s178
          %s180 = sshll.u32 [#allocation9], 4
          %s181 = int_to_ptr.vmem [resolvable:$true] %s180
          %186 = dma.hbm_to_vmem [thread:$0]  %s3, 512, %s181, [#allocation8], 128, 128, 8
        $region24: #{tpu_custom_call.1} parent=11 // pred_fallthru
          _
      $region12: #{tpu_custom_call.1} parent=5 // pred_fallthru
        _
      %p187 = scmp.lt.s32.totalorder %s18, 5
      // Predicated region
      $region25: #{tpu_custom_call.1} parent=5 // pred_check
        %p188 = pneg %p187
      $region26: #{tpu_custom_call.1} parent=5 // pred_check_branch
        %190 = sbr.rel (%p188) target = $region28
      $region27: #{tpu_custom_call.1} parent=5 // pred_region
        // Predicated region
        $region29: #{tpu_custom_call.1} parent=27 // pred_check
          %p191 = pneg %p63
        $region30: #{tpu_custom_call.1} parent=27 // pred_check_branch
          %193 = sbr.rel (%p191) target = $region32
        $region31: #{tpu_custom_call.1} parent=27 // pred_region
          #allocation12 [shape = 'u32[6]{0}', space=smem, size = 0x18, scoped, tag = 'DMA stride descriptor']
          %s194 = sand.u32 %s53, 1
          %s195 = scalar_lea.sflag [#allocation3], %s194
          %s196 = sand.u32 %s53, 1
          %s197 = smul.addr %s196, 32
          %s198 = scalar_lea.vmem [#allocation6], %s197
          %p199 = scmp.lt.s32.totalorder %s18, 2
          %s200 = scalar_select %p199, %s18, 2
          %s202 = ssub.s32 512, 512
          %203 = vsyncadd %s195, %s202
          %s204 = smul.addr %s200, 2
          %s205 = smul.addr %s204, 128
          %s206 = scalar_lea.hbm %s1, %s205
          %s208 = sshll.u32 1, 14
          %s209 = sxor.u32 4294967295, %s208
          %s211 = sld [smem:[#allocation0]]
          %s212 = sadd.s32 2, %s211
          %s214 = sshll.u32 7, 26
          %s215 = sxor.u32 4294967295, %s214
          %s216 = sand.u32 0, %s215
          %s217 = sshll.u32 %s212, 26
          %s218 = sor.u32 %s216, %s217
          %s219 = sshll.u32 %s198, 4
          %s220 = int_to_ptr.vmem [resolvable:$true] %s219
          %226 = sst [smem:[#allocation12]] 768
          %s227 = scalar_lea.smem [#allocation12], 1
          %228 = sst [smem:[%s227]] 256
          %s229 = scalar_lea.smem [#allocation12], 2
          %230 = sst [smem:[%s229]] 2
          %s231 = scalar_lea.smem [#allocation12], 3
          %232 = sst [smem:[%s231]] 128
          %s233 = scalar_lea.smem [#allocation12], 4
          %234 = sst [smem:[%s233]] 128
          %s235 = scalar_lea.smem [#allocation12], 5
          %236 = sst [smem:[%s235]] 8
          %238 = dma.general %s206, 512, %s220, %s195, [#allocation11], [#allocation12], %s218, 0
        $region32: #{tpu_custom_call.1} parent=27 // pred_fallthru
          _
      $region28: #{tpu_custom_call.1} parent=5 // pred_fallthru
        _
      %p239 = scmp.le.s32.totalorder 1, %s18
      %p240 = scmp.lt.s32.totalorder %s18, 6
      %p241 = pnand %p239, %p240
      %p242 = pneg %p241
      // Predicated region
      $region33: #{tpu_custom_call.1} parent=5 // pred_check
        _
      $region34: #{tpu_custom_call.1} parent=5 // pred_check_branch
        %244 = sbr.rel (%p241) target = $region36
      $region35: #{tpu_custom_call.1} parent=5 // pred_region
        %s245 = ssub.s32 %s18, 1
        // Predicated region
        $region37: #{tpu_custom_call.1} parent=35 // pred_check
          %p246 = pneg %p39
        $region38: #{tpu_custom_call.1} parent=35 // pred_check_branch
          %248 = sbr.rel (%p246) target = $region40
        $region39: #{tpu_custom_call.1} parent=35 // pred_region
          %249 = dma.done [#allocation5], 32
        $region40: #{tpu_custom_call.1} parent=35 // pred_fallthru
          _
        %s250 = sand.u32 %s56, 1
        %s251 = scalar_lea.sflag [#allocation3], %s250
        %s252 = sand.u32 %s56, 1
        %s253 = smul.addr %s252, 32
        %s254 = scalar_lea.vmem [#allocation6], %s253
        // Predicated region
        $region41: #{tpu_custom_call.1} parent=35 // pred_check
          %p255 = pneg %p69
        $region42: #{tpu_custom_call.1} parent=35 // pred_check_branch
          %257 = sbr.rel (%p255) target = $region44
        $region43: #{tpu_custom_call.1} parent=35 // pred_region
          %258 = dma.done %s251, 512
        $region44: #{tpu_custom_call.1} parent=35 // pred_fallthru
          _
        // Predicated region
        $region45: #{tpu_custom_call.1} parent=35 // pred_check
          %p259 = pneg %p90
        $region46: #{tpu_custom_call.1} parent=35 // pred_check_branch
          %261 = sbr.rel (%p259) target = $region48
        $region47: #{tpu_custom_call.1} parent=35 // pred_region
          %262 = dma.done [#allocation8], 512
        $region48: #{tpu_custom_call.1} parent=35 // pred_fallthru
          _
        // Predicated region
        $region49: #{tpu_custom_call.1} parent=35 // pred_check
          %p263 = pneg %p111
        $region50: #{tpu_custom_call.1} parent=35 // pred_check_branch
          %265 = sbr.rel (%p263) target = $region52
        $region51: #{tpu_custom_call.1} parent=35 // pred_region
          %266 = dma.done [#allocation8], 512
        $region52: #{tpu_custom_call.1} parent=35 // pred_fallthru
          _
        %267 = sfence
        %p268 = pneg %p39
        %p269 = pneg %p36
        %s270 = sand.u32 %s56, 1
        %s271 = scalar_lea.sflag [#allocation3], %s270
        %s272 = sand.u32 %s56, 1
        %s273 = smul.addr %s272, 32
        %s274 = scalar_lea.vmem [#allocation6], %s273
        %p275 = pneg %p69
        %p276 = pneg %p66
        %p277 = pneg %p90
        %p278 = pneg %p87
        %p279 = pneg %p111
        %p280 = pneg %p108
        %p281 = pneg %p137
        %p282 = pneg %p134
        %s283 = sand.u32 %s124, 1
        %s284 = scalar_lea.sflag [#allocation4], %s283
        %s285 = sand.u32 %s124, 1
        %s286 = smul.addr %s285, 32
        %s287 = scalar_lea.vmem [#allocation10], %s286
        %p288 = scmp.lt.s32.totalorder %s23, 2
        %s289 = scalar_select %p288, %s23, 2
        %p290 = scmp.lt.s32.totalorder %s23, 3
        // Predicated region
        $region53: #{tpu_custom_call.1} parent=35 // pred_check
          %p291 = pneg %p290
        $region54: #{tpu_custom_call.1} parent=35 // pred_check_branch
          %293 = sbr.rel (%p291) target = $region56
        $region55: #{tpu_custom_call.1} parent=35 // pred_region
          %v294 = vld [vmem:[%s254] sm:$0xff]
          %v295 = vld [vmem:[%s254 + $0x8] sm:$0xff]
          %v296 = vld [vmem:[%s254 + $0x10] sm:$0xff]
          %v297 = vld [vmem:[%s254 + $0x18] sm:$0xff]
          %vm298 = vcmask 130048
          %299 = vst.msk [vmem:[%s287] sm:$0xff] %vm298, %v294
          %300 = vst.msk [vmem:[%s287 + $0x8] sm:$0xff] %vm298, %v295
          %301 = vst.msk [vmem:[%s287 + $0x10] sm:$0xff] %vm298, %v296
          %302 = vst.msk [vmem:[%s287 + $0x18] sm:$0xff] %vm298, %v297
        $region56: #{tpu_custom_call.1} parent=35 // pred_fallthru
          _
        %p303 = scmp.eq.s32.totalorder %s23, 3
        // Predicated region
        $region57: #{tpu_custom_call.1} parent=35 // pred_check
          %p304 = pneg %p303
        $region58: #{tpu_custom_call.1} parent=35 // pred_check_branch
          %306 = sbr.rel (%p304) target = $region60
        $region59: #{tpu_custom_call.1} parent=35 // pred_region
          %s307 = sld [smem:[#allocation2]]
          %s308 = sld [smem:[#allocation2 + $0x2]]
          %s309 = sld [smem:[#allocation2 + $0x3]]
          %s310 = sld [smem:[#allocation2 + $0x4]]
          %v311 = vld [vmem:[#allocation7] sm:$0xff]
          %v312 = vld [vmem:[#allocation7 + $0x8] sm:$0xff]
          %v313 = vld [vmem:[#allocation7 + $0x10] sm:$0xff]
          %v314 = vld [vmem:[#allocation7 + $0x18] sm:$0xff]
          %vm315 = vcmask 130048
          %v316 = vsel %vm315, %v311, 0.0
          %v317 = vsel %vm315, %v312, 0.0
          %v318 = vadd.f32 %v316, %v317
          %v319 = vsel %vm315, %v313, 0.0
          %v320 = vadd.f32 %v318, %v319
          %v321 = vsel %vm315, %v314, 0.0
          %v322 = vadd.f32 %v320, %v321
          %323 = vadd.xlane.f32.xlu0 %v322
          %v324 = vpop.xlane.xlu0 %323
          %v325 = vrot.slane %v324, 4
          %v326 = vadd.f32 %v324, %v325
          %v327 = vrot.slane %v326, 2
          %v328 = vadd.f32 %v326, %v327
          %v329 = vrot.slane %v328, 1
          %v330 = vadd.f32 %v328, %v329
          %s331 = vtos %v330
          %v332 = vmul.f32 %v311, %v311
          %v333 = vmul.f32 %v312, %v312
          %v334 = vmul.f32 %v313, %v313
          %v335 = vmul.f32 %v314, %v314
          %v336 = vsel %vm315, %v332, 0.0
          %v337 = vsel %vm315, %v333, 0.0
          %v338 = vadd.f32 %v336, %v337
          %v339 = vsel %vm315, %v334, 0.0
          %v340 = vadd.f32 %v338, %v339
          %v341 = vsel %vm315, %v335, 0.0
          %v342 = vadd.f32 %v340, %v341
          %343 = vadd.xlane.f32.xlu0 %v342
          %v344 = vpop.xlane.xlu0 %343
          %v345 = vrot.slane %v344, 4
          %v346 = vadd.f32 %v344, %v345
          %v347 = vrot.slane %v346, 2
          %v348 = vadd.f32 %v346, %v347
          %v349 = vrot.slane %v348, 1
          %v350 = vadd.f32 %v348, %v349
          %s351 = vtos %v350
          %v352 = vrcp.pop 512.0
          %s353 = vtos %v352
          %s354 = smul.f32 %s331, %s353
          %v355 = vrcp.pop 512.0
          %s356 = vtos %v355
          %s357 = smul.f32 %s351, %s356
          %s358 = smul.f32 %s354, %s354
          %s359 = ssub.f32 %s357, %s358
          %s360 = smul.f32 %s307, %s307
          %s361 = smul.f32 %s360, %s359
          %s362 = sadd.f32 %s361, %s310
          %v363 = vstv %s362
          %v364 = vrsqrt.pop %v363
          %s365 = vtos %v364
          %s366 = smul.f32 %s308, %s307
          %s367 = smul.f32 %s366, %s365
          %s368 = smul.f32 %s367, %s354
          %s369 = ssub.f32 %s309, %s368
          %v370 = vstv %s367
          %v371 = vmul.f32 %v311, %v370
          %v372 = vmul.f32 %v312, %v370
          %v373 = vmul.f32 %v313, %v370
          %v374 = vmul.f32 %v314, %v370
          %v375 = vstv %s369
          %v376 = vadd.f32 %v371, %v375
          %v377 = vadd.f32 %v372, %v375
          %v378 = vadd.f32 %v373, %v375
          %v379 = vadd.f32 %v374, %v375
          %380 = vst.msk [vmem:[%s287] sm:$0xff] %vm315, %v376
          %381 = vst.msk [vmem:[%s287 + $0x8] sm:$0xff] %vm315, %v377
          %382 = vst.msk [vmem:[%s287 + $0x10] sm:$0xff] %vm315, %v378
          %383 = vst.msk [vmem:[%s287 + $0x18] sm:$0xff] %vm315, %v379
        $region60: #{tpu_custom_call.1} parent=35 // pred_fallthru
          _
        %p384 = scmp.eq.s32.totalorder %s23, 4
        // Predicated region
        $region61: #{tpu_custom_call.1} parent=35 // pred_check
          %p385 = pneg %p384
        $region62: #{tpu_custom_call.1} parent=35 // pred_check_branch
          %387 = sbr.rel (%p385) target = $region64
        $region63: #{tpu_custom_call.1} parent=35 // pred_region
          %s388 = sld [smem:[#allocation2 + $0x80]]
          %s389 = sld [smem:[#allocation2 + $0x82]]
          %s390 = sld [smem:[#allocation2 + $0x83]]
          %s391 = sld [smem:[#allocation2 + $0x84]]
          %v392 = vld [vmem:[#allocation9] sm:$0xff]
          %v393 = vld [vmem:[#allocation9 + $0x8] sm:$0xff]
          %v394 = vld [vmem:[#allocation9 + $0x10] sm:$0xff]
          %v395 = vld [vmem:[#allocation9 + $0x18] sm:$0xff]
          %vm396 = vcmask 130048
          %v397 = vsel %vm396, %v392, 0.0
          %v398 = vsel %vm396, %v393, 0.0
          %v399 = vadd.f32 %v397, %v398
          %v400 = vsel %vm396, %v394, 0.0
          %v401 = vadd.f32 %v399, %v400
          %v402 = vsel %vm396, %v395, 0.0
          %v403 = vadd.f32 %v401, %v402
          %404 = vadd.xlane.f32.xlu0 %v403
          %v405 = vpop.xlane.xlu0 %404
          %v406 = vrot.slane %v405, 4
          %v407 = vadd.f32 %v405, %v406
          %v408 = vrot.slane %v407, 2
          %v409 = vadd.f32 %v407, %v408
          %v410 = vrot.slane %v409, 1
          %v411 = vadd.f32 %v409, %v410
          %s412 = vtos %v411
          %v413 = vmul.f32 %v392, %v392
          %v414 = vmul.f32 %v393, %v393
          %v415 = vmul.f32 %v394, %v394
          %v416 = vmul.f32 %v395, %v395
          %v417 = vsel %vm396, %v413, 0.0
          %v418 = vsel %vm396, %v414, 0.0
          %v419 = vadd.f32 %v417, %v418
          %v420 = vsel %vm396, %v415, 0.0
          %v421 = vadd.f32 %v419, %v420
          %v422 = vsel %vm396, %v416, 0.0
          %v423 = vadd.f32 %v421, %v422
          %424 = vadd.xlane.f32.xlu0 %v423
          %v425 = vpop.xlane.xlu0 %424
          %v426 = vrot.slane %v425, 4
          %v427 = vadd.f32 %v425, %v426
          %v428 = vrot.slane %v427, 2
          %v429 = vadd.f32 %v427, %v428
          %v430 = vrot.slane %v429, 1
          %v431 = vadd.f32 %v429, %v430
          %s432 = vtos %v431
          %v433 = vrcp.pop 512.0
          %s434 = vtos %v433
          %s435 = smul.f32 %s412, %s434
          %v436 = vrcp.pop 512.0
          %s437 = vtos %v436
          %s438 = smul.f32 %s432, %s437
          %s439 = smul.f32 %s435, %s435
          %s440 = ssub.f32 %s438, %s439
          %s441 = smul.f32 %s388, %s388
          %s442 = smul.f32 %s441, %s440
          %s443 = sadd.f32 %s442, %s391
          %v444 = vstv %s443
          %v445 = vrsqrt.pop %v444
          %s446 = vtos %v445
          %s447 = smul.f32 %s389, %s388
          %s448 = smul.f32 %s447, %s446
          %s449 = smul.f32 %s448, %s435
          %s450 = ssub.f32 %s390, %s449
          %v451 = vstv %s448
          %v452 = vmul.f32 %v392, %v451
          %v453 = vmul.f32 %v393, %v451
          %v454 = vmul.f32 %v394, %v451
          %v455 = vmul.f32 %v395, %v451
          %v456 = vstv %s450
          %v457 = vadd.f32 %v452, %v456
          %v458 = vadd.f32 %v453, %v456
          %v459 = vadd.f32 %v454, %v456
          %v460 = vadd.f32 %v455, %v456
          %461 = vst.msk [vmem:[%s287] sm:$0xff] %vm396, %v457
          %462 = vst.msk [vmem:[%s287 + $0x8] sm:$0xff] %vm396, %v458
          %463 = vst.msk [vmem:[%s287 + $0x10] sm:$0xff] %vm396, %v459
          %464 = vst.msk [vmem:[%s287 + $0x18] sm:$0xff] %vm396, %v460
        $region64: #{tpu_custom_call.1} parent=35 // pred_fallthru
          _
        %s465 = sand.u32 %s124, 1
        %s466 = scalar_lea.sflag [#allocation4], %s465
        %s467 = sand.u32 %s124, 1
        %s468 = smul.addr %s467, 32
        %s469 = scalar_lea.vmem [#allocation10], %s468
        // Predicated region
        $region65: #{tpu_custom_call.1} parent=35 // pred_check
          %p470 = pneg %p134
        $region66: #{tpu_custom_call.1} parent=35 // pred_check_branch
          %472 = sbr.rel (%p470) target = $region68
        $region67: #{tpu_custom_call.1} parent=35 // pred_region
          #allocation14 [shape = 'u32[6]{0}', space=smem, size = 0x18, scoped, tag = 'DMA stride descriptor']
          %s474 = ssub.s32 512, 512
          %475 = vsyncadd %s466, %s474
          %s476 = smul.addr %s23, 2
          %s477 = smul.addr %s476, 128
          %s478 = scalar_lea.hbm %s4, %s477
          %s480 = sshll.u32 1, 14
          %s481 = sxor.u32 4294967295, %s480
          %s484 = sshll.u32 7, 18
          %s485 = sxor.u32 4294967295, %s484
          %s486 = sand.u32 0, %s485
          %s488 = sor.u32 %s486, 0
          %s490 = sshll.u32 3, 24
          %s491 = sxor.u32 4294967295, %s490
          %s492 = sand.u32 %s488, %s491
          %s494 = sor.u32 %s492, 0
          %s495 = sshll.u32 %s469, 4
          %s496 = int_to_ptr.vmem [resolvable:$true] %s495
          %502 = sst [smem:[#allocation14]] 256
          %s503 = scalar_lea.smem [#allocation14], 1
          %504 = sst [smem:[%s503]] 1280
          %s505 = scalar_lea.smem [#allocation14], 2
          %506 = sst [smem:[%s505]] 2
          %s507 = scalar_lea.smem [#allocation14], 3
          %508 = sst [smem:[%s507]] 128
          %s509 = scalar_lea.smem [#allocation14], 4
          %510 = sst [smem:[%s509]] 128
          %s511 = scalar_lea.smem [#allocation14], 5
          %512 = sst [smem:[%s511]] 8
          %514 = dma.general %s496, 512, %s478, %s466, [#allocation13], [#allocation14], %s494, 0
        $region68: #{tpu_custom_call.1} parent=35 // pred_fallthru
          _
      $region36: #{tpu_custom_call.1} parent=5 // pred_fallthru
        _
      %p515 = scmp.le.s32.totalorder 2, %s18
      // Predicated region
      $region69: #{tpu_custom_call.1} parent=5 // pred_check
        %p516 = pneg %p515
      $region70: #{tpu_custom_call.1} parent=5 // pred_check_branch
        %518 = sbr.rel (%p516) target = $region72
      $region71: #{tpu_custom_call.1} parent=5 // pred_region
        %s519 = ssub.s32 %s18, 2
        // Predicated region
        $region73: #{tpu_custom_call.1} parent=71 // pred_check
          %p520 = pneg %p140
        $region74: #{tpu_custom_call.1} parent=71 // pred_check_branch
          %522 = sbr.rel (%p520) target = $region76
        $region75: #{tpu_custom_call.1} parent=71 // pred_region
          %s523 = sand.u32 %s125, 1
          %s524 = scalar_lea.sflag [#allocation4], %s523
          %s525 = sand.u32 %s125, 1
          %s526 = smul.addr %s525, 32
          %s527 = scalar_lea.vmem [#allocation10], %s526
          %528 = dma.done %s524, 512
        $region76: #{tpu_custom_call.1} parent=71 // pred_fallthru
          _
      $region72: #{tpu_custom_call.1} parent=5 // pred_fallthru
        _
    $region6: #{tpu_custom_call.1} parent=1 // loop_footer
      %s22 = sadd.s32 1, %s18
    $region7: #{tpu_custom_call.1} parent=1 // loop_footer_branch
      %17 = sbr.rel target = $region3
    $region8: #{tpu_custom_call.1} parent=1 // loop_exit
      _
    %529 = vsyncpa [#allocation3], 1
    %s530 = scalar_lea.sflag [#allocation3], 1
    %531 = vsyncpa %s530, 1
    %532 = vsyncpa [#allocation8], 1
    %533 = vsyncpa [#allocation4], 1
    %s534 = scalar_lea.sflag [#allocation4], 1
    %535 = vsyncpa %s534, 1
    %536 = vsyncpa [#allocation5], 1
    %s537 = scalar_lea.sflag [#allocation5], 1
    %538 = vsyncpa %s537, 1

</llo_original>
